<compile_context>
chip_gen: v6e
topology: v6e:2x2x1
jax: 0.10.0
libtpu: 0.0.40
codegen_flags: <defaults>
</compile_context>

<pallas_src>
import jax
import jax.numpy as jnp
from jax.experimental import pallas as pl
from jax.experimental.pallas import tpu as pltpu

LANE = 128  # per-half lane width for mu / logvar / z (zero-padded up from latent size)


def _round_up(x, m):
    return ((x + m - 1) // m) * m


def _encoder_kernel(x_ref, w1_ref, b1_ref, w2_ref, b2_ref, eps_ref,
                    params_ref, z_ref):
    """Fused MLP encoder + diagonal-Gaussian reparameterization sample.

    Grid = (batch tiles,)  -- single "parallel" axis, full K resident.

    x_ref      : (TB, D_pad)        f32   flattened input tile (cast to bf16 in-kernel)
    w1_ref     : (D_pad, HID)       bf16  first-layer weight, full K extent resident
    b1_ref     : (1, HID)           f32
    w2_ref     : (HID, 2*LANE)      bf16  fused second-layer weight [mu cols | logvar cols]
    b2_ref     : (1, 2*LANE)        f32   fused second-layer bias
    eps_ref    : (TB, LANE)         f32   reparameterization noise (zero-padded)
    params_ref : (TB, 2*LANE)       f32   lane-dense [mu | logvar] output
    z_ref      : (TB, LANE)         f32   lane-dense sample output
    """
    lane = z_ref.shape[-1]

    # Layer 1: bf16 operands (cast in-kernel), f32 MXU accumulation, full-K single dot.
    x = x_ref[...].astype(jnp.bfloat16)
    h = jnp.dot(x, w1_ref[...], preferred_element_type=jnp.float32) + b1_ref[...]
    h = jnp.maximum(h, 0.0).astype(jnp.bfloat16)

    # Layer 2: single fused N=2*lane matmul -> [mu | logvar]; bias add in f32.
    p = jnp.dot(h, w2_ref[...], preferred_element_type=jnp.float32) + b2_ref[...]
    params_ref[...] = p

    # Reparameterization sample; the split at `lane` is vreg-aligned (free).
    mu = p[:, :lane]
    logvar = p[:, lane:]
    z_ref[...] = mu + jnp.exp(0.5 * logvar) * eps_ref[...]


def prepare_encoder_weights(w1, b1, w2, b2, *, lane=LANE):
    """One-time weight prep (run OUTSIDE the hot path): cast/pad w1, fuse+pad w2/b2."""
    D, HID = w1.shape
    two_l = w2.shape[1]
    L = two_l // 2
    lane = max(lane, _round_up(L, LANE))
    D_pad = _round_up(D, LANE)

    if D_pad == D:
        w1_p = w1.astype(jnp.bfloat16)
    else:
        w1_p = jnp.zeros((D_pad, HID), jnp.bfloat16).at[:D, :].set(w1.astype(jnp.bfloat16))
    b1_p = b1.reshape(1, HID).astype(jnp.float32)

    # Fused second layer: [mu columns (padded to lane) | logvar columns (padded to lane)].
    w2f = jnp.zeros((HID, 2 * lane), jnp.bfloat16)
    w2f = w2f.at[:, :L].set(w2[:, :L].astype(jnp.bfloat16))
    w2f = w2f.at[:, lane:lane + L].set(w2[:, L:].astype(jnp.bfloat16))
    b2r = b2.reshape(1, two_l).astype(jnp.float32)
    b2f = jnp.zeros((1, 2 * lane), jnp.float32)
    b2f = b2f.at[:, :L].set(b2r[:, :L])
    b2f = b2f.at[:, lane:lane + L].set(b2r[:, L:])

    # TODO(synk): if D_pad*HID*2B (x2 for double-buffering) ever exceeds a few MiB,
    # re-introduce a K-tiled reduction grid with an f32 VMEM accumulator.
    return {'w1': w1_p, 'b1': b1_p, 'w2': w2f, 'b2': b2f,
            'D': D, 'D_pad': D_pad, 'HID': HID, 'L': L, 'lane': lane}


def encoder_forward(x_nchw, weights, eps, *, tb=128):
    """Flatten NCHW input, tile the batch, run the fused kernel, return {'z', 'params'}."""
    B = x_nchw.shape[0]
    D = 1
    for s in x_nchw.shape[1:]:
        D *= s
    assert D == weights['D'], "input feature size does not match prepared weights"
    D_pad, HID = weights['w1'].shape
    L, lane = weights['L'], weights['lane']

    # ---- batch tiling: large tiles, but always >= 2 parallel tiles (v7x second TC) ----
    B8 = _round_up(B, 8)
    tb_eff = max(8, min(tb, (B8 // 16) * 8))
    B_pad = _round_up(max(B8, 2 * tb_eff), tb_eff)
    grid_b = B_pad // tb_eff

    # ---- per-call input handling: pad only when actually needed, no dtype-cast pass ---
    x_flat = x_nchw.reshape(B, D)
    if B_pad != B or D_pad != D:
        x_p = jnp.pad(x_flat, ((0, B_pad - B), (0, D_pad - D)))
    else:
        x_p = x_flat
    if B_pad != B or lane != L:
        eps_p = jnp.pad(eps, ((0, B_pad - B), (0, lane - L)))
    else:
        eps_p = eps

    # ---- advisory cost estimate for XLA scheduling around the custom call -------------
    flops = 2 * B_pad * D_pad * HID + 2 * B_pad * HID * 2 * lane
    bytes_accessed = (x_p.size * 4
                      + weights['w1'].size * 2 + weights['w2'].size * 2
                      + (weights['b1'].size + weights['b2'].size) * 4
                      + eps_p.size * 4
                      + B_pad * (2 * lane + lane) * 4)
    cost = pl.CostEstimate(flops=flops, transcendentals=B_pad * lane,
                           bytes_accessed=bytes_accessed)

    p_o, z_o = pl.pallas_call(
        _encoder_kernel,
        out_shape=(
            jax.ShapeDtypeStruct((B_pad, 2 * lane), jnp.float32),   # [mu | logvar]
            jax.ShapeDtypeStruct((B_pad, lane), jnp.float32),       # z
        ),
        grid_spec=pltpu.PrefetchScalarGridSpec(
            num_scalar_prefetch=0,
            grid=(grid_b,),
            in_specs=[
                pl.BlockSpec((tb_eff, D_pad), lambda b: (b, 0)),      # x (f32)
                pl.BlockSpec((D_pad, HID), lambda b: (0, 0)),         # w1 (bf16, resident)
                pl.BlockSpec((1, HID), lambda b: (0, 0)),             # b1
                pl.BlockSpec((HID, 2 * lane), lambda b: (0, 0)),      # fused w2 [mu|lv]
                pl.BlockSpec((1, 2 * lane), lambda b: (0, 0)),        # fused b2
                pl.BlockSpec((tb_eff, lane), lambda b: (b, 0)),       # eps
            ],
            out_specs=[
                pl.BlockSpec((tb_eff, 2 * lane), lambda b: (b, 0)),   # params
                pl.BlockSpec((tb_eff, lane), lambda b: (b, 0)),       # z
            ],
        ),
        compiler_params=pltpu.CompilerParams(
            dimension_semantics=("parallel",),
            vmem_limit_bytes=32 * 1024 * 1024,   # safe on v5e/v6e/v7x for these tiles
        ),
        cost_estimate=cost,
    )(x_p, weights['w1'], weights['b1'], weights['w2'], weights['b2'], eps_p)

    z = z_o[:B, :L]
    params = jnp.concatenate([p_o[:B, :L], p_o[:B, lane:lane + L]], axis=-1)
    return {'z': z, 'params': params}


if __name__ == "__main__":
    # Small shapes consistent with the forward pass:
    #   x: [B=2, C=4, H=16, W=16] -> flattened D = 1024; hidden = 32; latent = 8.
    B, C, Himg, Wimg = 2, 4, 16, 16
    D = C * Himg * Wimg
    HID = 32
    LATENT = 8

    key = jax.random.PRNGKey(0)
    kx, kw1, kb1, kw2, kb2, keps = jax.random.split(key, 6)

    x = jax.random.normal(kx, (B, C, Himg, Wimg), dtype=jnp.float32)

    # Deterministic parameter initialization (scaled Gaussian, like nn.Linear defaults).
    w1 = jax.random.normal(kw1, (D, HID), dtype=jnp.float32) * (1.0 / jnp.sqrt(D))
    b1 = jax.random.normal(kb1, (1, HID), dtype=jnp.float32) * 0.01
    w2 = jax.random.normal(kw2, (HID, 2 * LATENT), dtype=jnp.float32) * (1.0 / jnp.sqrt(HID))
    b2 = jax.random.normal(kb2, (1, 2 * LATENT), dtype=jnp.float32) * 0.01

    # Reparameterization noise passed in for a deterministic reference check.
    # TODO(synk): optionally generate eps in-kernel via pltpu.prng_seed/prng_random_bits
    # to make the sampler self-contained (removes one tiny input DMA).
    eps = jax.random.normal(keps, (B, LATENT), dtype=jnp.float32)

    weights = prepare_encoder_weights(w1, b1, w2, b2)   # one-time prep (cold path)
    out = encoder_forward(x, weights, eps)
    jax.block_until_ready(out)

    # Pure-JAX reference mirroring the kernel's precision scheme (bf16 MXU operands,
    # f32 accumulation for both layers).
    x_flat = x.reshape(B, D)
    h_ref = jnp.maximum(
        jnp.dot(x_flat.astype(jnp.bfloat16), w1.astype(jnp.bfloat16),
                preferred_element_type=jnp.float32) + b1, 0.0)
    p_ref = jnp.dot(h_ref.astype(jnp.bfloat16), w2.astype(jnp.bfloat16),
                    preferred_element_type=jnp.float32) + b2
    mu_ref, logvar_ref = p_ref[:, :LATENT], p_ref[:, LATENT:]
    z_ref = mu_ref + jnp.exp(0.5 * logvar_ref) * eps

    assert out['params'].shape == (B, 2 * LATENT)
    assert out['z'].shape == (B, LATENT)
    assert jnp.allclose(out['params'], p_ref, atol=2e-3, rtol=2e-3)
    assert jnp.allclose(out['z'], z_ref, atol=2e-3, rtol=2e-3)

    # TODO(synk): the abstract module takes arbitrary `network` / `approximate_posterior`
    # submodules; this kernel realizes the canonical MLP + diagonal-Gaussian VAE case.
    print("KERNEL_OK")
</pallas_src>

<mosaic_0001>
module attributes {stable_mosaic.version = 11 : i64} {
  func.func @_encoder_kernel(%arg0: i32, %arg1: memref<8x1024xf32, #tpu.memory_space<vmem>>, %arg2: memref<1024x32xbf16, #tpu.memory_space<vmem>>, %arg3: memref<1x32xf32, #tpu.memory_space<vmem>>, %arg4: memref<32x256xbf16, #tpu.memory_space<vmem>>, %arg5: memref<1x256xf32, #tpu.memory_space<vmem>>, %arg6: memref<8x128xf32, #tpu.memory_space<vmem>>, %arg7: memref<8x256xf32, #tpu.memory_space<vmem>>, %arg8: memref<8x128xf32, #tpu.memory_space<vmem>>) attributes {dimension_semantics = [#tpu.dimension_semantics<parallel>], iteration_bounds = array<i64: 2>, scalar_prefetch = 0 : i64, scratch_operands = 0 : i64, tpu.core_type = #tpu.core_type<tc>, window_params = [{transform_indices = @transform_0, window_bounds = array<i64: 8, 1024>}, {pipeline_mode = #tpu.pipeline_mode<synchronous>, transform_indices = @transform_1, window_bounds = array<i64: 1024, 32>}, {pipeline_mode = #tpu.pipeline_mode<synchronous>, transform_indices = @transform_2, window_bounds = array<i64: 1, 32>}, {pipeline_mode = #tpu.pipeline_mode<synchronous>, transform_indices = @transform_3, window_bounds = array<i64: 32, 256>}, {pipeline_mode = #tpu.pipeline_mode<synchronous>, transform_indices = @transform_4, window_bounds = array<i64: 1, 256>}, {transform_indices = @transform_5, window_bounds = array<i64: 8, 128>}, {transform_indices = @transform_6, window_bounds = array<i64: 8, 256>}, {transform_indices = @transform_7, window_bounds = array<i64: 8, 128>}]} {
    %c0 = arith.constant 0 : index
    %c0_0 = arith.constant 0 : index
    %0 = vector.load %arg1[%c0, %c0_0] : memref<8x1024xf32, #tpu.memory_space<vmem>>, vector<8x1024xf32>
    %1 = arith.truncf %0 : vector<8x1024xf32> to vector<8x1024xbf16>
    %c0_1 = arith.constant 0 : index
    %c0_2 = arith.constant 0 : index
    %2 = vector.load %arg2[%c0_1, %c0_2] : memref<1024x32xbf16, #tpu.memory_space<vmem>>, vector<1024x32xbf16>
    %cst = arith.constant dense<0.000000e+00> : vector<8x32xf32>
    %3 = tpu.matmul %1, %2, %cst {dimension_numbers = #tpu.dot_dimension_numbers<[1], [0], [0], [1], [0, 0, 1, 1], [], []>} : vector<8x1024xbf16>, vector<1024x32xbf16>, vector<8x32xf32> -> vector<8x32xf32>
    %c0_3 = arith.constant 0 : index
    %c0_4 = arith.constant 0 : index
    %4 = vector.load %arg3[%c0_3, %c0_4] : memref<1x32xf32, #tpu.memory_space<vmem>>, vector<1x32xf32>
    %5 = vector.broadcast %4 : vector<1x32xf32> to vector<8x32xf32>
    %6 = arith.addf %3, %5 : vector<8x32xf32>
    %cst_5 = arith.constant 0.000000e+00 : f32
    %7 = vector.broadcast %cst_5 : f32 to vector<8x32xf32>
    %8 = arith.maximumf %6, %7 : vector<8x32xf32>
    %9 = arith.truncf %8 : vector<8x32xf32> to vector<8x32xbf16>
    %c0_6 = arith.constant 0 : index
    %c0_7 = arith.constant 0 : index
    %10 = vector.load %arg4[%c0_6, %c0_7] : memref<32x256xbf16, #tpu.memory_space<vmem>>, vector<32x256xbf16>
    %cst_8 = arith.constant dense<0.000000e+00> : vector<8x256xf32>
    %11 = tpu.matmul %9, %10, %cst_8 {dimension_numbers = #tpu.dot_dimension_numbers<[1], [0], [0], [1], [0, 0, 1, 1], [], []>} : vector<8x32xbf16>, vector<32x256xbf16>, vector<8x256xf32> -> vector<8x256xf32>
    %c0_9 = arith.constant 0 : index
    %c0_10 = arith.constant 0 : index
    %12 = vector.load %arg5[%c0_9, %c0_10] : memref<1x256xf32, #tpu.memory_space<vmem>>, vector<1x256xf32>
    %13 = vector.broadcast %12 : vector<1x256xf32> to vector<8x256xf32>
    %14 = arith.addf %11, %13 : vector<8x256xf32>
    %c0_11 = arith.constant 0 : index
    %c0_12 = arith.constant 0 : index
    %15 = vector.load %arg7[%c0_11, %c0_12] : memref<8x256xf32, #tpu.memory_space<vmem>>, vector<8x256xf32>
    tpu.vector_store %arg7[%c0_11, %c0_12], %14 {strides = array<i32>} : memref<8x256xf32, #tpu.memory_space<vmem>>, vector<8x256xf32>,
    %16 = vector.extract_strided_slice %14 {offsets = [0, 0], sizes = [8, 128], strides = [1, 1]} : vector<8x256xf32> to vector<8x128xf32>
    %17 = vector.extract_strided_slice %14 {offsets = [0, 128], sizes = [8, 128], strides = [1, 1]} : vector<8x256xf32> to vector<8x128xf32>
    %cst_13 = arith.constant 5.000000e-01 : f32
    %18 = vector.broadcast %cst_13 : f32 to vector<8x128xf32>
    %19 = arith.mulf %18, %17 : vector<8x128xf32>
    %20 = math.exp %19 : vector<8x128xf32>
    %c0_14 = arith.constant 0 : index
    %c0_15 = arith.constant 0 : index
    %21 = vector.load %arg6[%c0_14, %c0_15] : memref<8x128xf32, #tpu.memory_space<vmem>>, vector<8x128xf32>
    %22 = arith.mulf %20, %21 : vector<8x128xf32>
    %23 = arith.addf %16, %22 : vector<8x128xf32>
    %c0_16 = arith.constant 0 : index
    %c0_17 = arith.constant 0 : index
    %24 = vector.load %arg8[%c0_16, %c0_17] : memref<8x128xf32, #tpu.memory_space<vmem>>, vector<8x128xf32>
    tpu.vector_store %arg8[%c0_16, %c0_17], %23 {strides = array<i32>} : memref<8x128xf32, #tpu.memory_space<vmem>>, vector<8x128xf32>,
    return
  }
  func.func @transform_0(%arg0: i32) -> (i32, i32) {
    %c0_i32 = arith.constant 0 : i32
    %c0_i32_0 = arith.constant 0 : i32
    return %arg0, %c0_i32 : i32, i32
  }
  func.func @transform_1(%arg0: i32) -> (i32, i32) {
    %c0_i32 = arith.constant 0 : i32
    %c0_i32_0 = arith.constant 0 : i32
    %c0_i32_1 = arith.constant 0 : i32
    return %c0_i32, %c0_i32_0 : i32, i32
  }
  func.func @transform_2(%arg0: i32) -> (i32, i32) {
    %c0_i32 = arith.constant 0 : i32
    %c0_i32_0 = arith.constant 0 : i32
    %c0_i32_1 = arith.constant 0 : i32
    return %c0_i32, %c0_i32_0 : i32, i32
  }
  func.func @transform_3(%arg0: i32) -> (i32, i32) {
    %c0_i32 = arith.constant 0 : i32
    %c0_i32_0 = arith.constant 0 : i32
    %c0_i32_1 = arith.constant 0 : i32
    return %c0_i32, %c0_i32_0 : i32, i32
  }
  func.func @transform_4(%arg0: i32) -> (i32, i32) {
    %c0_i32 = arith.constant 0 : i32
    %c0_i32_0 = arith.constant 0 : i32
    %c0_i32_1 = arith.constant 0 : i32
    return %c0_i32, %c0_i32_0 : i32, i32
  }
  func.func @transform_5(%arg0: i32) -> (i32, i32) {
    %c0_i32 = arith.constant 0 : i32
    %c0_i32_0 = arith.constant 0 : i32
    return %arg0, %c0_i32 : i32, i32
  }
  func.func @transform_6(%arg0: i32) -> (i32, i32) {
    %c0_i32 = arith.constant 0 : i32
    %c0_i32_0 = arith.constant 0 : i32
    return %arg0, %c0_i32 : i32, i32
  }
  func.func @transform_7(%arg0: i32) -> (i32, i32) {
    %c0_i32 = arith.constant 0 : i32
    %c0_i32_0 = arith.constant 0 : i32
    return %arg0, %c0_i32 : i32, i32
  }
}

</mosaic_0001>

<llo_original>
// kernel: tpu_custom_call.1
$region0: #{tpu_custom_call.1}
  #allocation0 [shape = 'u32[]', space=smem, size = 0x4, offset = 0x4, fixed_abs, tag = 'smem constant byte address 0x4 - core index']
  #allocation1 [shape = 'u32[144,128]{1,0:T(1,128)}', space=vmem, size = 0x12000, scoped, tag = 'internal scratch']
  %s0 = inlined_call_operand.vmem [shape: f32[16,1024], index: 0, kind: input, shape index: {}]
  %s1 = inlined_call_operand.vmem [shape: bf16[1024,32], index: 1, kind: input, shape index: {}]
  %s2 = inlined_call_operand.vmem [shape: f32[1,32], index: 2, kind: input, shape index: {}]
  %s3 = inlined_call_operand.vmem [shape: bf16[32,256], index: 3, kind: input, shape index: {}]
  %s4 = inlined_call_operand.vmem [shape: f32[1,256], index: 4, kind: input, shape index: {}]
  %s5 = inlined_call_operand.vmem [shape: f32[16,128], index: 5, kind: input, shape index: {}]
  %s6 = inlined_call_operand.hbm [shape: f32[16,256], index: 6, kind: output, shape index: {0}]
  %s7 = inlined_call_operand.hbm [shape: f32[16,128], index: 7, kind: output, shape index: {1}]
  %8 = xla_tuple %s6, %s7
  %s9 = sld [smem:[#allocation0]]
  $region65: #{tpu_custom_call.1} parent=0
    _
  %s11 = ssub.s32 1, %s9
  %s12 = scalar_select 0, %s11, %s9
  $region1: #{tpu_custom_call.1} parent=0
    #allocation2 [shape = 'u8[16384]{0}', space=vmem, size = 0x4000, scoped, tag = 'output window, operand 0']
    #allocation3 [shape = 's32[2]{0}', space=sflag, size = 0x8, scoped, tag = 'scoped memory for tpu_custom_call.1']
    #allocation4 [shape = 'u8[8192]{0}', space=vmem, size = 0x2000, scoped, tag = 'output window, operand 1']
    #allocation5 [shape = 's32[2]{0}', space=sflag, size = 0x8, scoped, tag = 'scoped memory for tpu_custom_call.1']
    %13 = vsyncpa [#allocation3], 0
    %s14 = scalar_lea.sflag [#allocation3], 1
    %15 = vsyncpa %s14, 0
    %16 = vsyncpa [#allocation5], 0
    %s17 = scalar_lea.sflag [#allocation5], 1
    %18 = vsyncpa %s17, 0
    loop: start=0, step=1, limit=4
    $region2: #{tpu_custom_call.1} parent=1 // loop_pre_header
      _
    $region3: #{tpu_custom_call.1} parent=1 // loop_header
      %s20 = sphi 0, %s24
      %p21 = scmp.ge.s32.totalorder %s20, 4
      %s30 = sphi 0, %s32
      %s33 = sphi 0, %s30
      %s34 = sphi 0, %s33
      %s50 = sphi 0, %s34
      %s54 = sphi 0, %s54
      %s56 = sphi 0, %s54
      %s57 = sphi 0, %s56
      %s71 = sphi 0, %s57
      %s75 = sphi 0, %s75
      %s77 = sphi 0, %s75
      %s78 = sphi 0, %s77
      %s92 = sphi 0, %s78
      %s96 = sphi 0, %s96
      %s98 = sphi 0, %s96
      %s99 = sphi 0, %s98
      %s113 = sphi 0, %s99
      %s117 = sphi 0, %s117
      %s119 = sphi 0, %s117
      %s120 = sphi 0, %s119
      %s134 = sphi 0, %s120
      %s140 = sphi 0, %s142
      %s143 = sphi 0, %s140
      %s144 = sphi 0, %s143
      %s160 = sphi 0, %s144
      %s166 = sphi 0, %s168
      %s169 = sphi 0, %s166
      %s170 = sphi 0, %s169
      %s186 = sphi 0, %s170
      %s192 = sphi 0, %s194
      %s195 = sphi 0, %s192
      %s196 = sphi 0, %s195
      %s212 = sphi 0, %s196
    $region4: #{tpu_custom_call.1} parent=1 // loop_header_branch
      %23 = sbr.rel (%p21) target = $region8
    $region5: #{tpu_custom_call.1} parent=1 // loop_body
      %s25 = ssub.s32 %s20, 1
      %s26 = ssub.s32 %s20, 2
      %s27 = sadd.s32 %s20, 1
      %s28 = ssub.s32 %s20, %s27
      %p29 = scmp.eq.s32.totalorder %s28, 0
      %s31 = sadd.s32 %s30, 1
      %s32 = scalar_select %p29, %s30, %s31
      %p35 = pneg %p29
      %p36 = scmp.eq.s32.totalorder %s20, 1
      %p37 = por %p35, %p36
      %p38 = scmp.ne.s32.totalorder %s30, %s33
      %p39 = scmp.eq.s32.totalorder %s20, 0
      %p40 = por %p38, %p39
      %p41 = scmp.ne.s32.totalorder %s30, %s33
      %p42 = scmp.eq.s32.totalorder %s25, 1
      %p43 = por %p41, %p42
      %p44 = scmp.ne.s32.totalorder %s33, %s34
      %p45 = scmp.eq.s32.totalorder %s25, 0
      %p46 = por %p44, %p45
      %p47 = scmp.ne.s32.totalorder %s33, %s34
      %p48 = scmp.eq.s32.totalorder %s26, 1
      %p49 = por %p47, %p48
      %p51 = scmp.ne.s32.totalorder %s34, %s50
      %p52 = scmp.eq.s32.totalorder %s26, 0
      %p53 = por %p51, %p52
      %s55 = sadd.s32 %s54, 1
      %p58 = scmp.eq.s32.totalorder %s20, 1
      %p59 = scmp.ne.s32.totalorder %s54, %s56
      %p60 = scmp.eq.s32.totalorder %s20, 0
      %p61 = por %p59, %p60
      %p62 = scmp.ne.s32.totalorder %s54, %s56
      %p63 = scmp.eq.s32.totalorder %s25, 1
      %p64 = por %p62, %p63
      %p65 = scmp.ne.s32.totalorder %s56, %s57
      %p66 = scmp.eq.s32.totalorder %s25, 0
      %p67 = por %p65, %p66
      %p68 = scmp.ne.s32.totalorder %s56, %s57
      %p69 = scmp.eq.s32.totalorder %s26, 1
      %p70 = por %p68, %p69
      %p72 = scmp.ne.s32.totalorder %s57, %s71
      %p73 = scmp.eq.s32.totalorder %s26, 0
      %p74 = por %p72, %p73
      %s76 = sadd.s32 %s75, 1
      %p79 = scmp.eq.s32.totalorder %s20, 1
      %p80 = scmp.ne.s32.totalorder %s75, %s77
      %p81 = scmp.eq.s32.totalorder %s20, 0
      %p82 = por %p80, %p81
      %p83 = scmp.ne.s32.totalorder %s75, %s77
      %p84 = scmp.eq.s32.totalorder %s25, 1
      %p85 = por %p83, %p84
      %p86 = scmp.ne.s32.totalorder %s77, %s78
      %p87 = scmp.eq.s32.totalorder %s25, 0
      %p88 = por %p86, %p87
      %p89 = scmp.ne.s32.totalorder %s77, %s78
      %p90 = scmp.eq.s32.totalorder %s26, 1
      %p91 = por %p89, %p90
      %p93 = scmp.ne.s32.totalorder %s78, %s92
      %p94 = scmp.eq.s32.totalorder %s26, 0
      %p95 = por %p93, %p94
      %s97 = sadd.s32 %s96, 1
      %p100 = scmp.eq.s32.totalorder %s20, 1
      %p101 = scmp.ne.s32.totalorder %s96, %s98
      %p102 = scmp.eq.s32.totalorder %s20, 0
      %p103 = por %p101, %p102
      %p104 = scmp.ne.s32.totalorder %s96, %s98
      %p105 = scmp.eq.s32.totalorder %s25, 1
      %p106 = por %p104, %p105
      %p107 = scmp.ne.s32.totalorder %s98, %s99
      %p108 = scmp.eq.s32.totalorder %s25, 0
      %p109 = por %p107, %p108
      %p110 = scmp.ne.s32.totalorder %s98, %s99
      %p111 = scmp.eq.s32.totalorder %s26, 1
      %p112 = por %p110, %p111
      %p114 = scmp.ne.s32.totalorder %s99, %s113
      %p115 = scmp.eq.s32.totalorder %s26, 0
      %p116 = por %p114, %p115
      %s118 = sadd.s32 %s117, 1
      %p121 = scmp.eq.s32.totalorder %s20, 1
      %p122 = scmp.ne.s32.totalorder %s117, %s119
      %p123 = scmp.eq.s32.totalorder %s20, 0
      %p124 = por %p122, %p123
      %p125 = scmp.ne.s32.totalorder %s117, %s119
      %p126 = scmp.eq.s32.totalorder %s25, 1
      %p127 = por %p125, %p126
      %p128 = scmp.ne.s32.totalorder %s119, %s120
      %p129 = scmp.eq.s32.totalorder %s25, 0
      %p130 = por %p128, %p129
      %p131 = scmp.ne.s32.totalorder %s119, %s120
      %p132 = scmp.eq.s32.totalorder %s26, 1
      %p133 = por %p131, %p132
      %p135 = scmp.ne.s32.totalorder %s120, %s134
      %p136 = scmp.eq.s32.totalorder %s26, 0
      %p137 = por %p135, %p136
      %s138 = ssub.s32 %s20, %s27
      %p139 = scmp.eq.s32.totalorder %s138, 0
      %s141 = sadd.s32 %s140, 1
      %s142 = scalar_select %p139, %s140, %s141
      %p145 = pneg %p139
      %p146 = scmp.eq.s32.totalorder %s20, 1
      %p147 = por %p145, %p146
      %p148 = scmp.ne.s32.totalorder %s140, %s143
      %p149 = scmp.eq.s32.totalorder %s20, 0
      %p150 = por %p148, %p149
      %p151 = scmp.ne.s32.totalorder %s140, %s143
      %p152 = scmp.eq.s32.totalorder %s25, 1
      %p153 = por %p151, %p152
      %p154 = scmp.ne.s32.totalorder %s143, %s144
      %p155 = scmp.eq.s32.totalorder %s25, 0
      %p156 = por %p154, %p155
      %p157 = scmp.ne.s32.totalorder %s143, %s144
      %p158 = scmp.eq.s32.totalorder %s26, 1
      %p159 = por %p157, %p158
      %p161 = scmp.ne.s32.totalorder %s144, %s160
      %p162 = scmp.eq.s32.totalorder %s26, 0
      %p163 = por %p161, %p162
      %s164 = ssub.s32 %s20, %s27
      %p165 = scmp.eq.s32.totalorder %s164, 0
      %s167 = sadd.s32 %s166, 1
      %s168 = scalar_select %p165, %s166, %s167
      %p171 = pneg %p165
      %p172 = scmp.eq.s32.totalorder %s20, 1
      %p173 = por %p171, %p172
      %p174 = scmp.ne.s32.totalorder %s166, %s169
      %p175 = scmp.eq.s32.totalorder %s20, 0
      %p176 = por %p174, %p175
      %p177 = scmp.ne.s32.totalorder %s166, %s169
      %p178 = scmp.eq.s32.totalorder %s25, 1
      %p179 = por %p177, %p178
      %p180 = scmp.ne.s32.totalorder %s169, %s170
      %p181 = scmp.eq.s32.totalorder %s25, 0
      %p182 = por %p180, %p181
      %p183 = scmp.ne.s32.totalorder %s169, %s170
      %p184 = scmp.eq.s32.totalorder %s26, 1
      %p185 = por %p183, %p184
      %p187 = scmp.ne.s32.totalorder %s170, %s186
      %p188 = scmp.eq.s32.totalorder %s26, 0
      %p189 = por %p187, %p188
      %s190 = ssub.s32 %s20, %s27
      %p191 = scmp.eq.s32.totalorder %s190, 0
      %s193 = sadd.s32 %s192, 1
      %s194 = scalar_select %p191, %s192, %s193
      %p197 = pneg %p191
      %p198 = scmp.eq.s32.totalorder %s20, 1
      %p199 = por %p197, %p198
      %p200 = scmp.ne.s32.totalorder %s192, %s195
      %p201 = scmp.eq.s32.totalorder %s20, 0
      %p202 = por %p200, %p201
      %p203 = scmp.ne.s32.totalorder %s192, %s195
      %p204 = scmp.eq.s32.totalorder %s25, 1
      %p205 = por %p203, %p204
      %p206 = scmp.ne.s32.totalorder %s195, %s196
      %p207 = scmp.eq.s32.totalorder %s25, 0
      %p208 = por %p206, %p207
      %p209 = scmp.ne.s32.totalorder %s195, %s196
      %p210 = scmp.eq.s32.totalorder %s26, 1
      %p211 = por %p209, %p210
      %p213 = scmp.ne.s32.totalorder %s196, %s212
      %p214 = scmp.eq.s32.totalorder %s26, 0
      %p215 = por %p213, %p214
      %p216 = scmp.le.s32.totalorder 1, %s20
      %p217 = scmp.lt.s32.totalorder %s20, 3
      %p218 = pnand %p216, %p217
      %p219 = pneg %p218
      // Predicated region
      $region9: #{tpu_custom_call.1} parent=5 // pred_check
        _
      $region10: #{tpu_custom_call.1} parent=5 // pred_check_branch
        %221 = sbr.rel (%p218) target = $region12
      $region11: #{tpu_custom_call.1} parent=5 // pred_region
        %s222 = ssub.s32 %s20, 1
        // Predicated region
        $region13: #{tpu_custom_call.1} parent=11 // pred_check
          %p223 = pneg %p67
        $region14: #{tpu_custom_call.1} parent=11 // pred_check_branch
          %225 = sbr.rel (%p223) target = $region16
        $region15: #{tpu_custom_call.1} parent=11 // pred_region
          _
        $region16: #{tpu_custom_call.1} parent=11 // pred_fallthru
          _
        // Predicated region
        $region17: #{tpu_custom_call.1} parent=11 // pred_check
          %p226 = pneg %p88
        $region18: #{tpu_custom_call.1} parent=11 // pred_check_branch
          %228 = sbr.rel (%p226) target = $region20
        $region19: #{tpu_custom_call.1} parent=11 // pred_region
          _
        $region20: #{tpu_custom_call.1} parent=11 // pred_fallthru
          _
        // Predicated region
        $region21: #{tpu_custom_call.1} parent=11 // pred_check
          %p229 = pneg %p109
        $region22: #{tpu_custom_call.1} parent=11 // pred_check_branch
          %231 = sbr.rel (%p229) target = $region24
        $region23: #{tpu_custom_call.1} parent=11 // pred_region
          _
        $region24: #{tpu_custom_call.1} parent=11 // pred_fallthru
          _
        // Predicated region
        $region25: #{tpu_custom_call.1} parent=11 // pred_check
          %p232 = pneg %p130
        $region26: #{tpu_custom_call.1} parent=11 // pred_check_branch
          %234 = sbr.rel (%p232) target = $region28
        $region27: #{tpu_custom_call.1} parent=11 // pred_region
          _
        $region28: #{tpu_custom_call.1} parent=11 // pred_fallthru
          _
      $region12: #{tpu_custom_call.1} parent=5 // pred_fallthru
        _
      %p235 = scmp.lt.s32.totalorder %s20, 2
      // Predicated region
      $region29: #{tpu_custom_call.1} parent=5 // pred_check
        %p236 = pneg %p235
      $region30: #{tpu_custom_call.1} parent=5 // pred_check_branch
        %238 = sbr.rel (%p236) target = $region32
      $region31: #{tpu_custom_call.1} parent=5 // pred_region
        // Predicated region
        $region33: #{tpu_custom_call.1} parent=31 // pred_check
          %p239 = pneg %p40
        $region34: #{tpu_custom_call.1} parent=31 // pred_check_branch
          %241 = sbr.rel (%p239) target = $region36
        $region35: #{tpu_custom_call.1} parent=31 // pred_region
          %p242 = scmp.lt.s32.totalorder %s20, 1
          %s243 = scalar_select %p242, %s20, 1
          %s244 = smul.addr %s243, 8
          %s245 = smul.addr %s244, 8
          %s246 = scalar_lea.vmem %s0, %s245
        $region36: #{tpu_custom_call.1} parent=31 // pred_fallthru
          _
        // Predicated region
        $region37: #{tpu_custom_call.1} parent=31 // pred_check
          %p247 = pneg %p150
        $region38: #{tpu_custom_call.1} parent=31 // pred_check_branch
          %249 = sbr.rel (%p247) target = $region40
        $region39: #{tpu_custom_call.1} parent=31 // pred_region
          %p250 = scmp.lt.s32.totalorder %s20, 1
          %s251 = scalar_select %p250, %s20, 1
          %s252 = smul.addr %s251, 8
          %s253 = scalar_lea.vmem %s5, %s252
        $region40: #{tpu_custom_call.1} parent=31 // pred_fallthru
          _
      $region32: #{tpu_custom_call.1} parent=5 // pred_fallthru
        _
      %p254 = scmp.le.s32.totalorder 1, %s20
      %p255 = scmp.lt.s32.totalorder %s20, 3
      %p256 = pnand %p254, %p255
      %p257 = pneg %p256
      // Predicated region
      $region41: #{tpu_custom_call.1} parent=5 // pred_check
        _
      $region42: #{tpu_custom_call.1} parent=5 // pred_check_branch
        %259 = sbr.rel (%p256) target = $region44
      $region43: #{tpu_custom_call.1} parent=5 // pred_region
        %s260 = ssub.s32 %s20, 1
        %p261 = scmp.lt.s32.totalorder %s25, 1
        %s262 = scalar_select %p261, %s25, 1
        %s263 = smul.addr %s262, 8
        %s264 = smul.addr %s263, 8
        %s265 = scalar_lea.vmem %s0, %s264
        %p266 = pneg %p46
        %p267 = pneg %p43
        %p268 = pneg %p67
        %p269 = pneg %p64
        %p270 = pneg %p88
        %p271 = pneg %p85
        %p272 = pneg %p109
        %p273 = pneg %p106
        %p274 = pneg %p130
        %p275 = pneg %p127
        %p276 = scmp.lt.s32.totalorder %s25, 1
        %s277 = scalar_select %p276, %s25, 1
        %s278 = smul.addr %s277, 8
        %s279 = scalar_lea.vmem %s5, %s278
        %p280 = pneg %p156
        %p281 = pneg %p153
        %p282 = pneg %p182
        %p283 = pneg %p179
        %s284 = sand.u32 %s169, 1
        %s285 = scalar_lea.sflag [#allocation3], %s284
        %s286 = sand.u32 %s169, 1
        %s287 = smul.addr %s286, 16
        %s288 = scalar_lea.vmem [#allocation2], %s287
        %p289 = pneg %p208
        %p290 = pneg %p205
        %s291 = sand.u32 %s195, 1
        %s292 = scalar_lea.sflag [#allocation5], %s291
        %s293 = sand.u32 %s195, 1
        %s294 = smul.addr %s293, 8
        %s295 = scalar_lea.vmem [#allocation4], %s294
        %p296 = scmp.lt.s32.totalorder %s25, 1
        %s297 = scalar_select %p296, %s25, 1
        %s298 = smul.addr %s297, 8
        %s299 = smul.addr %s298, 8
        %s300 = scalar_lea.vmem %s0, %s299
        %p301 = scmp.lt.s32.totalorder %s25, 1
        %s302 = scalar_select %p301, %s25, 1
        %s303 = smul.addr %s302, 8
        %s304 = scalar_lea.vmem %s5, %s303
        %v306 = vld [vmem:[%s300] sm:$0xff]
        %v307 = vld [vmem:[%s300 + $0x8] sm:$0xff]
        %v308 = vld [vmem:[%s300 + $0x10] sm:$0xff]
        %v309 = vld [vmem:[%s300 + $0x18] sm:$0xff]
        %v310 = vld [vmem:[%s300 + $0x20] sm:$0xff]
        %v311 = vld [vmem:[%s300 + $0x28] sm:$0xff]
        %v312 = vld [vmem:[%s300 + $0x30] sm:$0xff]
        %v313 = vld [vmem:[%s300 + $0x38] sm:$0xff]
        %v314 = vpack.c.bf16 %v306, %v306
        %v315 = vpack.c.bf16 %v307, %v307
        %v316 = vpack.c.bf16 %v308, %v308
        %v317 = vpack.c.bf16 %v309, %v309
        %v318 = vpack.c.bf16 %v310, %v310
        %v319 = vpack.c.bf16 %v311, %v311
        %v320 = vpack.c.bf16 %v312, %v312
        %v321 = vpack.c.bf16 %v313, %v313
        %v322 = vld [vmem:[%s1] sm:$0xf]
        %v323 = vld [vmem:[%s1 + $0x4] sm:$0xf]
        %v324 = vld [vmem:[%s1 + $0x8] sm:$0xf]
        %v325 = vld [vmem:[%s1 + $0xc] sm:$0xf]
        %v326 = vld [vmem:[%s1 + $0x10] sm:$0xf]
        %v327 = vld [vmem:[%s1 + $0x14] sm:$0xf]
        %v328 = vld [vmem:[%s1 + $0x18] sm:$0xf]
        %v329 = vld [vmem:[%s1 + $0x1c] sm:$0xf]
        %v330 = vld [vmem:[%s1 + $0x20] sm:$0xf]
        %v331 = vld [vmem:[%s1 + $0x24] sm:$0xf]
        %v332 = vld [vmem:[%s1 + $0x28] sm:$0xf]
        %v333 = vld [vmem:[%s1 + $0x2c] sm:$0xf]
        %v334 = vld [vmem:[%s1 + $0x30] sm:$0xf]
        %v335 = vld [vmem:[%s1 + $0x34] sm:$0xf]
        %v336 = vld [vmem:[%s1 + $0x38] sm:$0xf]
        %v337 = vld [vmem:[%s1 + $0x3c] sm:$0xf]
        %v338 = vld [vmem:[%s1 + $0x40] sm:$0xf]
        %v339 = vld [vmem:[%s1 + $0x44] sm:$0xf]
        %v340 = vld [vmem:[%s1 + $0x48] sm:$0xf]
        %v341 = vld [vmem:[%s1 + $0x4c] sm:$0xf]
        %v342 = vld [vmem:[%s1 + $0x50] sm:$0xf]
        %v343 = vld [vmem:[%s1 + $0x54] sm:$0xf]
        %v344 = vld [vmem:[%s1 + $0x58] sm:$0xf]
        %v345 = vld [vmem:[%s1 + $0x5c] sm:$0xf]
        %v346 = vld [vmem:[%s1 + $0x60] sm:$0xf]
        %v347 = vld [vmem:[%s1 + $0x64] sm:$0xf]
        %v348 = vld [vmem:[%s1 + $0x68] sm:$0xf]
        %v349 = vld [vmem:[%s1 + $0x6c] sm:$0xf]
        %v350 = vld [vmem:[%s1 + $0x70] sm:$0xf]
        %v351 = vld [vmem:[%s1 + $0x74] sm:$0xf]
        %v352 = vld [vmem:[%s1 + $0x78] sm:$0xf]
        %v353 = vld [vmem:[%s1 + $0x7c] sm:$0xf]
        %v354 = vld [vmem:[%s1 + $0x80] sm:$0xf]
        %v355 = vld [vmem:[%s1 + $0x84] sm:$0xf]
        %v356 = vld [vmem:[%s1 + $0x88] sm:$0xf]
        %v357 = vld [vmem:[%s1 + $0x8c] sm:$0xf]
        %v358 = vld [vmem:[%s1 + $0x90] sm:$0xf]
        %v359 = vld [vmem:[%s1 + $0x94] sm:$0xf]
        %v360 = vld [vmem:[%s1 + $0x98] sm:$0xf]
        %v361 = vld [vmem:[%s1 + $0x9c] sm:$0xf]
        %v362 = vld [vmem:[%s1 + $0xa0] sm:$0xf]
        %v363 = vld [vmem:[%s1 + $0xa4] sm:$0xf]
        %v364 = vld [vmem:[%s1 + $0xa8] sm:$0xf]
        %v365 = vld [vmem:[%s1 + $0xac] sm:$0xf]
        %v366 = vld [vmem:[%s1 + $0xb0] sm:$0xf]
        %v367 = vld [vmem:[%s1 + $0xb4] sm:$0xf]
        %v368 = vld [vmem:[%s1 + $0xb8] sm:$0xf]
        %v369 = vld [vmem:[%s1 + $0xbc] sm:$0xf]
        %v370 = vld [vmem:[%s1 + $0xc0] sm:$0xf]
        %v371 = vld [vmem:[%s1 + $0xc4] sm:$0xf]
        %v372 = vld [vmem:[%s1 + $0xc8] sm:$0xf]
        %v373 = vld [vmem:[%s1 + $0xcc] sm:$0xf]
        %v374 = vld [vmem:[%s1 + $0xd0] sm:$0xf]
        %v375 = vld [vmem:[%s1 + $0xd4] sm:$0xf]
        %v376 = vld [vmem:[%s1 + $0xd8] sm:$0xf]
        %v377 = vld [vmem:[%s1 + $0xdc] sm:$0xf]
        %v378 = vld [vmem:[%s1 + $0xe0] sm:$0xf]
        %v379 = vld [vmem:[%s1 + $0xe4] sm:$0xf]
        %v380 = vld [vmem:[%s1 + $0xe8] sm:$0xf]
        %v381 = vld [vmem:[%s1 + $0xec] sm:$0xf]
        %v382 = vld [vmem:[%s1 + $0xf0] sm:$0xf]
        %v383 = vld [vmem:[%s1 + $0xf4] sm:$0xf]
        %v384 = vld [vmem:[%s1 + $0xf8] sm:$0xf]
        %v385 = vld [vmem:[%s1 + $0xfc] sm:$0xf]
        %v386 = vld [vmem:[%s1 + $0x100] sm:$0xf]
        %v387 = vld [vmem:[%s1 + $0x104] sm:$0xf]
        %v388 = vld [vmem:[%s1 + $0x108] sm:$0xf]
        %v389 = vld [vmem:[%s1 + $0x10c] sm:$0xf]
        %v390 = vld [vmem:[%s1 + $0x110] sm:$0xf]
        %v391 = vld [vmem:[%s1 + $0x114] sm:$0xf]
        %v392 = vld [vmem:[%s1 + $0x118] sm:$0xf]
        %v393 = vld [vmem:[%s1 + $0x11c] sm:$0xf]
        %v394 = vld [vmem:[%s1 + $0x120] sm:$0xf]
        %v395 = vld [vmem:[%s1 + $0x124] sm:$0xf]
        %v396 = vld [vmem:[%s1 + $0x128] sm:$0xf]
        %v397 = vld [vmem:[%s1 + $0x12c] sm:$0xf]
        %v398 = vld [vmem:[%s1 + $0x130] sm:$0xf]
        %v399 = vld [vmem:[%s1 + $0x134] sm:$0xf]
        %v400 = vld [vmem:[%s1 + $0x138] sm:$0xf]
        %v401 = vld [vmem:[%s1 + $0x13c] sm:$0xf]
        %v402 = vld [vmem:[%s1 + $0x140] sm:$0xf]
        %v403 = vld [vmem:[%s1 + $0x144] sm:$0xf]
        %v404 = vld [vmem:[%s1 + $0x148] sm:$0xf]
        %v405 = vld [vmem:[%s1 + $0x14c] sm:$0xf]
        %v406 = vld [vmem:[%s1 + $0x150] sm:$0xf]
        %v407 = vld [vmem:[%s1 + $0x154] sm:$0xf]
        %v408 = vld [vmem:[%s1 + $0x158] sm:$0xf]
        %v409 = vld [vmem:[%s1 + $0x15c] sm:$0xf]
        %v410 = vld [vmem:[%s1 + $0x160] sm:$0xf]
        %v411 = vld [vmem:[%s1 + $0x164] sm:$0xf]
        %v412 = vld [vmem:[%s1 + $0x168] sm:$0xf]
        %v413 = vld [vmem:[%s1 + $0x16c] sm:$0xf]
        %v414 = vld [vmem:[%s1 + $0x170] sm:$0xf]
        %v415 = vld [vmem:[%s1 + $0x174] sm:$0xf]
        %v416 = vld [vmem:[%s1 + $0x178] sm:$0xf]
        %v417 = vld [vmem:[%s1 + $0x17c] sm:$0xf]
        %v418 = vld [vmem:[%s1 + $0x180] sm:$0xf]
        %v419 = vld [vmem:[%s1 + $0x184] sm:$0xf]
        %v420 = vld [vmem:[%s1 + $0x188] sm:$0xf]
        %v421 = vld [vmem:[%s1 + $0x18c] sm:$0xf]
        %v422 = vld [vmem:[%s1 + $0x190] sm:$0xf]
        %v423 = vld [vmem:[%s1 + $0x194] sm:$0xf]
        %v424 = vld [vmem:[%s1 + $0x198] sm:$0xf]
        %v425 = vld [vmem:[%s1 + $0x19c] sm:$0xf]
        %v426 = vld [vmem:[%s1 + $0x1a0] sm:$0xf]
        %v427 = vld [vmem:[%s1 + $0x1a4] sm:$0xf]
        %v428 = vld [vmem:[%s1 + $0x1a8] sm:$0xf]
        %v429 = vld [vmem:[%s1 + $0x1ac] sm:$0xf]
        %v430 = vld [vmem:[%s1 + $0x1b0] sm:$0xf]
        %v431 = vld [vmem:[%s1 + $0x1b4] sm:$0xf]
        %v432 = vld [vmem:[%s1 + $0x1b8] sm:$0xf]
        %v433 = vld [vmem:[%s1 + $0x1bc] sm:$0xf]
        %v434 = vld [vmem:[%s1 + $0x1c0] sm:$0xf]
        %v435 = vld [vmem:[%s1 + $0x1c4] sm:$0xf]
        %v436 = vld [vmem:[%s1 + $0x1c8] sm:$0xf]
        %v437 = vld [vmem:[%s1 + $0x1cc] sm:$0xf]
        %v438 = vld [vmem:[%s1 + $0x1d0] sm:$0xf]
        %v439 = vld [vmem:[%s1 + $0x1d4] sm:$0xf]
        %v440 = vld [vmem:[%s1 + $0x1d8] sm:$0xf]
        %v441 = vld [vmem:[%s1 + $0x1dc] sm:$0xf]
        %v442 = vld [vmem:[%s1 + $0x1e0] sm:$0xf]
        %v443 = vld [vmem:[%s1 + $0x1e4] sm:$0xf]
        %v444 = vld [vmem:[%s1 + $0x1e8] sm:$0xf]
        %v445 = vld [vmem:[%s1 + $0x1ec] sm:$0xf]
        %v446 = vld [vmem:[%s1 + $0x1f0] sm:$0xf]
        %v447 = vld [vmem:[%s1 + $0x1f4] sm:$0xf]
        %v448 = vld [vmem:[%s1 + $0x1f8] sm:$0xf]
        %v449 = vld [vmem:[%s1 + $0x1fc] sm:$0xf]
        %v450 = vld [vmem:[%s2] sm:$0x1]
        %v452 = vlaneseq
        %v453 = vshrl.u32 %v452, 7
        %v454 = vsub.s32 0, %v453
        %v455 = vrot.slane %v450, %v454
        %v585 = vunpack.c.l.b16 %v322
        %v586 = vunpack.c.l.b16 %v323
        %v587 = vunpack.c.l.b16 %v324
        %v588 = vunpack.c.l.b16 %v325
        %v589 = vunpack.c.l.b16 %v326
        %v590 = vunpack.c.l.b16 %v327
        %v591 = vunpack.c.l.b16 %v328
        %v592 = vunpack.c.l.b16 %v329
        %v593 = vunpack.c.l.b16 %v330
        %v594 = vunpack.c.l.b16 %v331
        %v595 = vunpack.c.l.b16 %v332
        %v596 = vunpack.c.l.b16 %v333
        %v597 = vunpack.c.l.b16 %v334
        %v598 = vunpack.c.l.b16 %v335
        %v599 = vunpack.c.l.b16 %v336
        %v600 = vunpack.c.l.b16 %v337
        %v601 = vunpack.c.l.b16 %v338
        %v602 = vunpack.c.l.b16 %v339
        %v603 = vunpack.c.l.b16 %v340
        %v604 = vunpack.c.l.b16 %v341
        %v605 = vunpack.c.l.b16 %v342
        %v606 = vunpack.c.l.b16 %v343
        %v607 = vunpack.c.l.b16 %v344
        %v608 = vunpack.c.l.b16 %v345
        %v609 = vunpack.c.l.b16 %v346
        %v610 = vunpack.c.l.b16 %v347
        %v611 = vunpack.c.l.b16 %v348
        %v612 = vunpack.c.l.b16 %v349
        %v613 = vunpack.c.l.b16 %v350
        %v614 = vunpack.c.l.b16 %v351
        %v615 = vunpack.c.l.b16 %v352
        %v616 = vunpack.c.l.b16 %v353
        %v617 = vunpack.c.l.b16 %v354
        %v618 = vunpack.c.l.b16 %v355
        %v619 = vunpack.c.l.b16 %v356
        %v620 = vunpack.c.l.b16 %v357
        %v621 = vunpack.c.l.b16 %v358
        %v622 = vunpack.c.l.b16 %v359
        %v623 = vunpack.c.l.b16 %v360
        %v624 = vunpack.c.l.b16 %v361
        %v625 = vunpack.c.l.b16 %v362
        %v626 = vunpack.c.l.b16 %v363
        %v627 = vunpack.c.l.b16 %v364
        %v628 = vunpack.c.l.b16 %v365
        %v629 = vunpack.c.l.b16 %v366
        %v630 = vunpack.c.l.b16 %v367
        %v631 = vunpack.c.l.b16 %v368
        %v632 = vunpack.c.l.b16 %v369
        %v633 = vunpack.c.l.b16 %v370
        %v634 = vunpack.c.l.b16 %v371
        %v635 = vunpack.c.l.b16 %v372
        %v636 = vunpack.c.l.b16 %v373
        %v637 = vunpack.c.l.b16 %v374
        %v638 = vunpack.c.l.b16 %v375
        %v639 = vunpack.c.l.b16 %v376
        %v640 = vunpack.c.l.b16 %v377
        %v641 = vunpack.c.l.b16 %v378
        %v642 = vunpack.c.l.b16 %v379
        %v643 = vunpack.c.l.b16 %v380
        %v644 = vunpack.c.l.b16 %v381
        %v645 = vunpack.c.l.b16 %v382
        %v646 = vunpack.c.l.b16 %v383
        %v647 = vunpack.c.l.b16 %v384
        %v648 = vunpack.c.l.b16 %v385
        %v649 = vunpack.c.l.b16 %v386
        %v650 = vunpack.c.l.b16 %v387
        %v651 = vunpack.c.l.b16 %v388
        %v652 = vunpack.c.l.b16 %v389
        %v653 = vunpack.c.l.b16 %v390
        %v654 = vunpack.c.l.b16 %v391
        %v655 = vunpack.c.l.b16 %v392
        %v656 = vunpack.c.l.b16 %v393
        %v657 = vunpack.c.l.b16 %v394
        %v658 = vunpack.c.l.b16 %v395
        %v659 = vunpack.c.l.b16 %v396
        %v660 = vunpack.c.l.b16 %v397
        %v661 = vunpack.c.l.b16 %v398
        %v662 = vunpack.c.l.b16 %v399
        %v663 = vunpack.c.l.b16 %v400
        %v664 = vunpack.c.l.b16 %v401
        %v665 = vunpack.c.l.b16 %v402
        %v666 = vunpack.c.l.b16 %v403
        %v667 = vunpack.c.l.b16 %v404
        %v668 = vunpack.c.l.b16 %v405
        %v669 = vunpack.c.l.b16 %v406
        %v670 = vunpack.c.l.b16 %v407
        %v671 = vunpack.c.l.b16 %v408
        %v672 = vunpack.c.l.b16 %v409
        %v673 = vunpack.c.l.b16 %v410
        %v674 = vunpack.c.l.b16 %v411
        %v675 = vunpack.c.l.b16 %v412
        %v676 = vunpack.c.l.b16 %v413
        %v677 = vunpack.c.l.b16 %v414
        %v678 = vunpack.c.l.b16 %v415
        %v679 = vunpack.c.l.b16 %v416
        %v680 = vunpack.c.l.b16 %v417
        %v681 = vunpack.c.l.b16 %v418
        %v682 = vunpack.c.l.b16 %v419
        %v683 = vunpack.c.l.b16 %v420
        %v684 = vunpack.c.l.b16 %v421
        %v685 = vunpack.c.l.b16 %v422
        %v686 = vunpack.c.l.b16 %v423
        %v687 = vunpack.c.l.b16 %v424
        %v688 = vunpack.c.l.b16 %v425
        %v689 = vunpack.c.l.b16 %v426
        %v690 = vunpack.c.l.b16 %v427
        %v691 = vunpack.c.l.b16 %v428
        %v692 = vunpack.c.l.b16 %v429
        %v693 = vunpack.c.l.b16 %v430
        %v694 = vunpack.c.l.b16 %v431
        %v695 = vunpack.c.l.b16 %v432
        %v696 = vunpack.c.l.b16 %v433
        %v697 = vunpack.c.l.b16 %v434
        %v698 = vunpack.c.l.b16 %v435
        %v699 = vunpack.c.l.b16 %v436
        %v700 = vunpack.c.l.b16 %v437
        %v701 = vunpack.c.l.b16 %v438
        %v702 = vunpack.c.l.b16 %v439
        %v703 = vunpack.c.l.b16 %v440
        %v704 = vunpack.c.l.b16 %v441
        %v705 = vunpack.c.l.b16 %v442
        %v706 = vunpack.c.l.b16 %v443
        %v707 = vunpack.c.l.b16 %v444
        %v708 = vunpack.c.l.b16 %v445
        %v709 = vunpack.c.l.b16 %v446
        %v710 = vunpack.c.l.b16 %v447
        %v711 = vunpack.c.l.b16 %v448
        %v712 = vunpack.c.l.b16 %v449
        %v713 = vpack.c.b16 %v586, %v585
        %v714 = vpack.c.b16 %v588, %v587
        %v715 = vpack.c.b16 %v590, %v589
        %v716 = vpack.c.b16 %v592, %v591
        %v717 = vpack.c.b16 %v594, %v593
        %v718 = vpack.c.b16 %v596, %v595
        %v719 = vpack.c.b16 %v598, %v597
        %v720 = vpack.c.b16 %v600, %v599
        %v721 = vpack.c.b16 %v602, %v601
        %v722 = vpack.c.b16 %v604, %v603
        %v723 = vpack.c.b16 %v606, %v605
        %v724 = vpack.c.b16 %v608, %v607
        %v725 = vpack.c.b16 %v610, %v609
        %v726 = vpack.c.b16 %v612, %v611
        %v727 = vpack.c.b16 %v614, %v613
        %v728 = vpack.c.b16 %v616, %v615
        %v729 = vpack.c.b16 %v618, %v617
        %v730 = vpack.c.b16 %v620, %v619
        %v731 = vpack.c.b16 %v622, %v621
        %v732 = vpack.c.b16 %v624, %v623
        %v733 = vpack.c.b16 %v626, %v625
        %v734 = vpack.c.b16 %v628, %v627
        %v735 = vpack.c.b16 %v630, %v629
        %v736 = vpack.c.b16 %v632, %v631
        %v737 = vpack.c.b16 %v634, %v633
        %v738 = vpack.c.b16 %v636, %v635
        %v739 = vpack.c.b16 %v638, %v637
        %v740 = vpack.c.b16 %v640, %v639
        %v741 = vpack.c.b16 %v642, %v641
        %v742 = vpack.c.b16 %v644, %v643
        %v743 = vpack.c.b16 %v646, %v645
        %v744 = vpack.c.b16 %v648, %v647
        %v745 = vpack.c.b16 %v650, %v649
        %v746 = vpack.c.b16 %v652, %v651
        %v747 = vpack.c.b16 %v654, %v653
        %v748 = vpack.c.b16 %v656, %v655
        %v749 = vpack.c.b16 %v658, %v657
        %v750 = vpack.c.b16 %v660, %v659
        %v751 = vpack.c.b16 %v662, %v661
        %v752 = vpack.c.b16 %v664, %v663
        %v753 = vpack.c.b16 %v666, %v665
        %v754 = vpack.c.b16 %v668, %v667
        %v755 = vpack.c.b16 %v670, %v669
        %v756 = vpack.c.b16 %v672, %v671
        %v757 = vpack.c.b16 %v674, %v673
        %v758 = vpack.c.b16 %v676, %v675
        %v759 = vpack.c.b16 %v678, %v677
        %v760 = vpack.c.b16 %v680, %v679
        %v761 = vpack.c.b16 %v682, %v681
        %v762 = vpack.c.b16 %v684, %v683
        %v763 = vpack.c.b16 %v686, %v685
        %v764 = vpack.c.b16 %v688, %v687
        %v765 = vpack.c.b16 %v690, %v689
        %v766 = vpack.c.b16 %v692, %v691
        %v767 = vpack.c.b16 %v694, %v693
        %v768 = vpack.c.b16 %v696, %v695
        %v769 = vpack.c.b16 %v698, %v697
        %v770 = vpack.c.b16 %v700, %v699
        %v771 = vpack.c.b16 %v702, %v701
        %v772 = vpack.c.b16 %v704, %v703
        %v773 = vpack.c.b16 %v706, %v705
        %v774 = vpack.c.b16 %v708, %v707
        %v775 = vpack.c.b16 %v710, %v709
        %v776 = vpack.c.b16 %v712, %v711
        %841 = vmatprep.subr.bf16.mxu0 0
        %842 = vmatpush1.bf16.msra.mxu0 %v720
        %843 = vmatprep.subr.bf16.mxu0 0
        %844 = vmatpush1.bf16.msra.mxu0 %v719
        %845 = vmatprep.subr.bf16.mxu0 0
        %846 = vmatpush1.bf16.msra.mxu0 %v718
        %847 = vmatprep.subr.bf16.mxu0 0
        %848 = vmatpush1.bf16.msra.mxu0 %v717
        %849 = vmatprep.subr.bf16.mxu0 0
        %850 = vmatpush1.bf16.msra.mxu0 %v716
        %851 = vmatprep.subr.bf16.mxu0 0
        %852 = vmatpush1.bf16.msra.mxu0 %v715
        %853 = vmatprep.subr.bf16.mxu0 0
        %854 = vmatpush1.bf16.msra.mxu0 %v714
        %855 = vmatprep.subr.bf16.mxu0 0
        %856 = vmatpush1.bf16.msra.mxu0 %v713
        %857 = vmatprep.subr.bf16.mxu0 0
        %858 = vmatpush2.bf16.msra.mxu0 %v728
        %859 = vmatprep.subr.bf16.mxu0 0
        %860 = vmatpush2.bf16.msra.mxu0 %v727
        %861 = vmatprep.subr.bf16.mxu0 0
        %862 = vmatpush2.bf16.msra.mxu0 %v726
        %863 = vmatprep.subr.bf16.mxu0 0
        %864 = vmatpush2.bf16.msra.mxu0 %v725
        %865 = vmatprep.subr.bf16.mxu0 0
        %866 = vmatpush2.bf16.msra.mxu0 %v724
        %867 = vmatprep.subr.bf16.mxu0 0
        %868 = vmatpush2.bf16.msra.mxu0 %v723
        %869 = vmatprep.subr.bf16.mxu0 0
        %870 = vmatpush2.bf16.msra.mxu0 %v722
        %871 = vmatprep.subr.bf16.mxu0 0
        %872 = vmatpush2.bf16.msra.mxu0 %v721
        %873 = vmatprep.mubr.bf16.mxu0 %v315
        %874 = vmatmul.mubr.bf16.gmra.mxu0 %v314
        %v875 = vpop.f32.mrf.mxu0
        %v876 = vadd.f32 %v455, %v875
        %v877 = vpop.f32.mrf.mxu0
        %v878 = vpop.f32.mrf.mxu0
        %v879 = vpop.f32.mrf.mxu0
        %880 = vdwg.mxu0
        %881 = vmatprep.subr.bf16.mxu0 0
        %882 = vmatpush1.bf16.msra.mxu0 %v736
        %883 = vmatprep.subr.bf16.mxu0 0
        %884 = vmatpush1.bf16.msra.mxu0 %v735
        %885 = vmatprep.subr.bf16.mxu0 0
        %886 = vmatpush1.bf16.msra.mxu0 %v734
        %887 = vmatprep.subr.bf16.mxu0 0
        %888 = vmatpush1.bf16.msra.mxu0 %v733
        %889 = vmatprep.subr.bf16.mxu0 0
        %890 = vmatpush1.bf16.msra.mxu0 %v732
        %891 = vmatprep.subr.bf16.mxu0 0
        %892 = vmatpush1.bf16.msra.mxu0 %v731
        %893 = vmatprep.subr.bf16.mxu0 0
        %894 = vmatpush1.bf16.msra.mxu0 %v730
        %895 = vmatprep.subr.bf16.mxu0 0
        %896 = vmatpush1.bf16.msra.mxu0 %v729
        %897 = vmatprep.subr.bf16.mxu0 0
        %898 = vmatpush2.bf16.msra.mxu0 %v744
        %899 = vmatprep.subr.bf16.mxu0 0
        %900 = vmatpush2.bf16.msra.mxu0 %v743
        %901 = vmatprep.subr.bf16.mxu0 0
        %902 = vmatpush2.bf16.msra.mxu0 %v742
        %903 = vmatprep.subr.bf16.mxu0 0
        %904 = vmatpush2.bf16.msra.mxu0 %v741
        %905 = vmatprep.subr.bf16.mxu0 0
        %906 = vmatpush2.bf16.msra.mxu0 %v740
        %907 = vmatprep.subr.bf16.mxu0 0
        %908 = vmatpush2.bf16.msra.mxu0 %v739
        %909 = vmatprep.subr.bf16.mxu0 0
        %910 = vmatpush2.bf16.msra.mxu0 %v738
        %911 = vmatprep.subr.bf16.mxu0 0
        %912 = vmatpush2.bf16.msra.mxu0 %v737
        %913 = vmatprep.mubr.bf16.mxu0 %v317
        %914 = vmatmul.mubr.bf16.gmra.mxu0 %v316
        %v915 = vpop.f32.mrf.mxu0
        %v916 = vadd.f32 %v876, %v915
        %v917 = vpop.f32.mrf.mxu0
        %v918 = vpop.f32.mrf.mxu0
        %v919 = vpop.f32.mrf.mxu0
        %920 = vdwg.mxu0
        %921 = vmatprep.subr.bf16.mxu0 0
        %922 = vmatpush1.bf16.msra.mxu0 %v752
        %923 = vmatprep.subr.bf16.mxu0 0
        %924 = vmatpush1.bf16.msra.mxu0 %v751
        %925 = vmatprep.subr.bf16.mxu0 0
        %926 = vmatpush1.bf16.msra.mxu0 %v750
        %927 = vmatprep.subr.bf16.mxu0 0
        %928 = vmatpush1.bf16.msra.mxu0 %v749
        %929 = vmatprep.subr.bf16.mxu0 0
        %930 = vmatpush1.bf16.msra.mxu0 %v748
        %931 = vmatprep.subr.bf16.mxu0 0
        %932 = vmatpush1.bf16.msra.mxu0 %v747
        %933 = vmatprep.subr.bf16.mxu0 0
        %934 = vmatpush1.bf16.msra.mxu0 %v746
        %935 = vmatprep.subr.bf16.mxu0 0
        %936 = vmatpush1.bf16.msra.mxu0 %v745
        %937 = vmatprep.subr.bf16.mxu0 0
        %938 = vmatpush2.bf16.msra.mxu0 %v760
        %939 = vmatprep.subr.bf16.mxu0 0
        %940 = vmatpush2.bf16.msra.mxu0 %v759
        %941 = vmatprep.subr.bf16.mxu0 0
        %942 = vmatpush2.bf16.msra.mxu0 %v758
        %943 = vmatprep.subr.bf16.mxu0 0
        %944 = vmatpush2.bf16.msra.mxu0 %v757
        %945 = vmatprep.subr.bf16.mxu0 0
        %946 = vmatpush2.bf16.msra.mxu0 %v756
        %947 = vmatprep.subr.bf16.mxu0 0
        %948 = vmatpush2.bf16.msra.mxu0 %v755
        %949 = vmatprep.subr.bf16.mxu0 0
        %950 = vmatpush2.bf16.msra.mxu0 %v754
        %951 = vmatprep.subr.bf16.mxu0 0
        %952 = vmatpush2.bf16.msra.mxu0 %v753
        %953 = vmatprep.mubr.bf16.mxu0 %v319
        %954 = vmatmul.mubr.bf16.gmra.mxu0 %v318
        %v955 = vpop.f32.mrf.mxu0
        %v956 = vadd.f32 %v916, %v955
        %v957 = vpop.f32.mrf.mxu0
        %v958 = vpop.f32.mrf.mxu0
        %v959 = vpop.f32.mrf.mxu0
        %960 = vdwg.mxu0
        %961 = vmatprep.subr.bf16.mxu0 0
        %962 = vmatpush1.bf16.msra.mxu0 %v768
        %963 = vmatprep.subr.bf16.mxu0 0
        %964 = vmatpush1.bf16.msra.mxu0 %v767
        %965 = vmatprep.subr.bf16.mxu0 0
        %966 = vmatpush1.bf16.msra.mxu0 %v766
        %967 = vmatprep.subr.bf16.mxu0 0
        %968 = vmatpush1.bf16.msra.mxu0 %v765
        %969 = vmatprep.subr.bf16.mxu0 0
        %970 = vmatpush1.bf16.msra.mxu0 %v764
        %971 = vmatprep.subr.bf16.mxu0 0
        %972 = vmatpush1.bf16.msra.mxu0 %v763
        %973 = vmatprep.subr.bf16.mxu0 0
        %974 = vmatpush1.bf16.msra.mxu0 %v762
        %975 = vmatprep.subr.bf16.mxu0 0
        %976 = vmatpush1.bf16.msra.mxu0 %v761
        %977 = vmatprep.subr.bf16.mxu0 0
        %978 = vmatpush2.bf16.msra.mxu0 %v776
        %979 = vmatprep.subr.bf16.mxu0 0
        %980 = vmatpush2.bf16.msra.mxu0 %v775
        %981 = vmatprep.subr.bf16.mxu0 0
        %982 = vmatpush2.bf16.msra.mxu0 %v774
        %983 = vmatprep.subr.bf16.mxu0 0
        %984 = vmatpush2.bf16.msra.mxu0 %v773
        %985 = vmatprep.subr.bf16.mxu0 0
        %986 = vmatpush2.bf16.msra.mxu0 %v772
        %987 = vmatprep.subr.bf16.mxu0 0
        %988 = vmatpush2.bf16.msra.mxu0 %v771
        %989 = vmatprep.subr.bf16.mxu0 0
        %990 = vmatpush2.bf16.msra.mxu0 %v770
        %991 = vmatprep.subr.bf16.mxu0 0
        %992 = vmatpush2.bf16.msra.mxu0 %v769
        %993 = vmatprep.mubr.bf16.mxu0 %v321
        %994 = vmatmul.mubr.bf16.gmra.mxu0 %v320
        %v995 = vpop.f32.mrf.mxu0
        %v996 = vadd.f32 %v956, %v995
        %v997 = vpop.f32.mrf.mxu0
        %v998 = vpop.f32.mrf.mxu0
        %v999 = vpop.f32.mrf.mxu0
        %1000 = vdwg.mxu0
        %v1001 = vmax.f32 %v996, 0.0
        %v1002 = vpack.c.bf16 %v1001, %v1001
        %v1003 = vld [vmem:[%s3] sm:$0xff]
        %v1004 = vld [vmem:[%s3 + $0x8] sm:$0xff]
        %v1005 = vld [vmem:[%s3 + $0x10] sm:$0xff]
        %v1006 = vld [vmem:[%s3 + $0x18] sm:$0xff]
        %v1007 = vld [vmem:[%s4] sm:$0x3]
        %v1009 = vlaneseq
        %v1010 = vshrl.u32 %v1009, 7
        %v1011 = vsub.s32 0, %v1010
        %v1012 = vrot.slane %v1007, %v1011
        %v1013 = vlaneseq
        %v1014 = vshrl.u32 %v1013, 7
        %v1015 = vsub.s32 1, %v1014
        %v1016 = vrot.slane %v1007, %v1015
        %v1023 = vunpack.c.l.b16 %v1003
        %v1024 = vunpack.c.h.b16 %v1003
        %v1025 = vunpack.c.l.b16 %v1004
        %v1026 = vunpack.c.h.b16 %v1004
        %v1027 = vunpack.c.l.b16 %v1005
        %v1028 = vunpack.c.h.b16 %v1005
        %v1029 = vunpack.c.l.b16 %v1006
        %v1030 = vunpack.c.h.b16 %v1006
        %v1031 = vpack.c.b16 %v1025, %v1023
        %v1032 = vpack.c.b16 %v1026, %v1024
        %v1033 = vpack.c.b16 %v1029, %v1027
        %v1034 = vpack.c.b16 %v1030, %v1028
        %vm1039 = vcmask 261120
        %v1041 = vsel %vm1039, %v1002, 0
        %1043 = vmatprep.subr.bf16.mxu0 0
        %1044 = vmatpush1.bf16.msra.mxu0 0
        %1045 = vmatprep.subr.bf16.mxu0 0
        %1046 = vmatpush1.bf16.msra.mxu0 0
        %1047 = vmatprep.subr.bf16.mxu0 0
        %1048 = vmatpush1.bf16.msra.mxu0 0
        %1049 = vmatprep.subr.bf16.mxu0 0
        %1050 = vmatpush1.bf16.msra.mxu0 0
        %1051 = vmatprep.subr.bf16.mxu0 0
        %1052 = vmatpush1.bf16.msra.mxu0 0
        %1053 = vmatprep.subr.bf16.mxu0 0
        %1054 = vmatpush1.bf16.msra.mxu0 0
        %1055 = vmatprep.subr.bf16.mxu0 %v1034
        %1056 = vmatpush1.bf16.msra.mxu0 %v1033
        %1057 = vmatprep.subr.bf16.mxu0 %v1032
        %1058 = vmatpush1.bf16.msra.mxu0 %v1031
        %1059 = vmatprep.subr.bf16.mxu0 0
        %1060 = vmatpush2.bf16.msra.mxu0 0
        %1061 = vmatprep.subr.bf16.mxu0 0
        %1062 = vmatpush2.bf16.msra.mxu0 0
        %1063 = vmatprep.subr.bf16.mxu0 0
        %1064 = vmatpush2.bf16.msra.mxu0 0
        %1065 = vmatprep.subr.bf16.mxu0 0
        %1066 = vmatpush2.bf16.msra.mxu0 0
        %1067 = vmatprep.subr.bf16.mxu0 0
        %1068 = vmatpush2.bf16.msra.mxu0 0
        %1069 = vmatprep.subr.bf16.mxu0 0
        %1070 = vmatpush2.bf16.msra.mxu0 0
        %1071 = vmatprep.subr.bf16.mxu0 0
        %1072 = vmatpush2.bf16.msra.mxu0 0
        %1073 = vmatprep.subr.bf16.mxu0 0
        %1074 = vmatpush2.bf16.msra.mxu0 0
        %1075 = vmatprep.mubr.bf16.mxu0 0
        %1076 = vmatmul.mubr.bf16.gmra.mxu0 %v1041
        %v1077 = vpop.f32.mrf.mxu0
        %v1078 = vadd.f32 %v1012, %v1077
        %v1079 = vpop.f32.mrf.mxu0
        %v1080 = vadd.f32 %v1016, %v1079
        %v1081 = vpop.f32.mrf.mxu0
        %v1082 = vpop.f32.mrf.mxu0
        %1083 = vdwg.mxu0
        %1084 = vst [vmem:[%s288] sm:$0xff] %v1078
        %1085 = vst [vmem:[%s288 + $0x8] sm:$0xff] %v1080
        %v1086 = vmul.f32 %v1080, 0.5
        %v1087 = vmul.f32 %v1086, 1.442695
        %v1088 = vpow.pop %v1087
        %v1089 = vld [vmem:[%s304] sm:$0xff]
        %v1090 = vmul.f32 %v1088, %v1089
        %v1091 = vadd.f32 %v1078, %v1090
        %1092 = vst [vmem:[%s295] sm:$0xff] %v1091
        %s1093 = sand.u32 %s169, 1
        %s1094 = scalar_lea.sflag [#allocation3], %s1093
        %s1095 = sand.u32 %s169, 1
        %s1096 = smul.addr %s1095, 16
        %s1097 = scalar_lea.vmem [#allocation2], %s1096
        %s1098 = sand.u32 %s195, 1
        %s1099 = scalar_lea.sflag [#allocation5], %s1098
        %s1100 = sand.u32 %s195, 1
        %s1101 = smul.addr %s1100, 8
        %s1102 = scalar_lea.vmem [#allocation4], %s1101
        // Predicated region
        $region45: #{tpu_custom_call.1} parent=43 // pred_check
          %p1103 = pneg %p179
        $region46: #{tpu_custom_call.1} parent=43 // pred_check_branch
          %1105 = sbr.rel (%p1103) target = $region48
        $region47: #{tpu_custom_call.1} parent=43 // pred_region
          %s1107 = ssub.s32 256, 256
          %1108 = vsyncadd %s1094, %s1107
          %s1109 = smul.addr %s25, 2
          %s1110 = smul.addr %s1109, 128
          %s1111 = scalar_lea.hbm %s6, %s1110
          %s1113 = sshll.u32 %s1097, 4
          %s1114 = int_to_ptr.vmem [resolvable:$true] %s1113
          %1116 = dma.vmem_to_hbm [thread:$0]  %s1114, 256, %s1111, %s1094
        $region48: #{tpu_custom_call.1} parent=43 // pred_fallthru
          _
        // Predicated region
        $region49: #{tpu_custom_call.1} parent=43 // pred_check
          %p1117 = pneg %p205
        $region50: #{tpu_custom_call.1} parent=43 // pred_check_branch
          %1119 = sbr.rel (%p1117) target = $region52
        $region51: #{tpu_custom_call.1} parent=43 // pred_region
          %s1121 = ssub.s32 128, 128
          %1122 = vsyncadd %s1099, %s1121
          %s1123 = smul.addr %s25, 128
          %s1124 = scalar_lea.hbm %s7, %s1123
          %s1126 = sshll.u32 %s1102, 4
          %s1127 = int_to_ptr.vmem [resolvable:$true] %s1126
          %1129 = dma.vmem_to_hbm [thread:$0]  %s1127, 128, %s1124, %s1099
        $region52: #{tpu_custom_call.1} parent=43 // pred_fallthru
          _
      $region44: #{tpu_custom_call.1} parent=5 // pred_fallthru
        _
      %p1130 = scmp.le.s32.totalorder 2, %s20
      // Predicated region
      $region53: #{tpu_custom_call.1} parent=5 // pred_check
        %p1131 = pneg %p1130
      $region54: #{tpu_custom_call.1} parent=5 // pred_check_branch
        %1133 = sbr.rel (%p1131) target = $region56
      $region55: #{tpu_custom_call.1} parent=5 // pred_region
        %s1134 = ssub.s32 %s20, 2
        // Predicated region
        $region57: #{tpu_custom_call.1} parent=55 // pred_check
          %p1135 = pneg %p185
        $region58: #{tpu_custom_call.1} parent=55 // pred_check_branch
          %1137 = sbr.rel (%p1135) target = $region60
        $region59: #{tpu_custom_call.1} parent=55 // pred_region
          %s1138 = sand.u32 %s170, 1
          %s1139 = scalar_lea.sflag [#allocation3], %s1138
          %s1140 = sand.u32 %s170, 1
          %s1141 = smul.addr %s1140, 16
          %s1142 = scalar_lea.vmem [#allocation2], %s1141
          %1143 = dma.done %s1139, 256
        $region60: #{tpu_custom_call.1} parent=55 // pred_fallthru
          _
        // Predicated region
        $region61: #{tpu_custom_call.1} parent=55 // pred_check
          %p1144 = pneg %p211
        $region62: #{tpu_custom_call.1} parent=55 // pred_check_branch
          %1146 = sbr.rel (%p1144) target = $region64
        $region63: #{tpu_custom_call.1} parent=55 // pred_region
          %s1147 = sand.u32 %s196, 1
          %s1148 = scalar_lea.sflag [#allocation5], %s1147
          %s1149 = sand.u32 %s196, 1
          %s1150 = smul.addr %s1149, 8
          %s1151 = scalar_lea.vmem [#allocation4], %s1150
          %1152 = dma.done %s1148, 128
        $region64: #{tpu_custom_call.1} parent=55 // pred_fallthru
          _
      $region56: #{tpu_custom_call.1} parent=5 // pred_fallthru
        _
    $region6: #{tpu_custom_call.1} parent=1 // loop_footer
      %s24 = sadd.s32 1, %s20
    $region7: #{tpu_custom_call.1} parent=1 // loop_footer_branch
      %19 = sbr.rel target = $region3
    $region8: #{tpu_custom_call.1} parent=1 // loop_exit
      _
    %1153 = vsyncpa [#allocation3], 1
    %s1154 = scalar_lea.sflag [#allocation3], 1
    %1155 = vsyncpa %s1154, 1
    %1156 = vsyncpa [#allocation5], 1
    %s1157 = scalar_lea.sflag [#allocation5], 1
    %1158 = vsyncpa %s1157, 1

</llo_original>
